<compile_context>
chip_gen: v7x
topology: tpu7x:2x2x1
jax: 0.10.0
libtpu: 0.0.40
codegen_flags: <defaults>
</compile_context>

<pallas_src>
import functools

import jax
import jax.numpy as jnp
from jax import lax
from jax.experimental import pallas as pl
from jax.experimental.pallas import tpu as pltpu

input_size = 4
hidden_size = 5
num_classes = 3

_LANES = 128
_SUBLANES = 8


def _round_up(a, b):
    return ((a + b - 1) // b) * b


def mlp_kernel(x_ref, w1_ref, b1_ref, w2_ref, b2_ref, o_ref, *, sub):
    """One grid step.

    x_ref : (input_size, TS, 128) f32 VMEM — batch packed on sublanes and lanes.
    o_ref : (num_classes, TS, 128) f32 VMEM.
    w*/b* : whole-array SMEM scalars, resident across all grid steps.
    """
    ts = x_ref.shape[1]           # static (multiple of `sub`)
    n_sub = ts // sub             # static trip count

    # Hoist the 35 SMEM scalar reads out of the strip-mine loop (cheap slds;
    # the vector broadcast still happens at each FMA site, so this adds no
    # vreg pressure — scalar-operand FMAs per slab, per the perf review).
    w1s = [[w1_ref[k, j] for j in range(hidden_size)] for k in range(input_size)]
    b1s = [b1_ref[0, j] for j in range(hidden_size)]
    w2s = [[w2_ref[j, c] for c in range(num_classes)] for j in range(hidden_size)]
    b2s = [b2_ref[0, c] for c in range(num_classes)]

    def body(s, carry):
        off = pl.multiple_of(s * sub, sub)

        # (sub, 128) fully-packed slabs, one per input feature.
        xs = [x_ref[k, pl.ds(off, sub), :] for k in range(input_size)]

        # Hidden layer on the VPU: h_j = relu(b1_j + sum_k w1[k, j] * x_k)
        h = []
        for j in range(hidden_size):
            acc = w1s[0][j] * xs[0]
            for k in range(1, input_size):
                acc = acc + w1s[k][j] * xs[k]
            h.append(jnp.maximum(acc + b1s[j], 0.0))

        # Output layer: o_c = b2_c + sum_j w2[j, c] * h_j — stored directly
        # per class (no sublane-axis concat / relayout).
        for c in range(num_classes):
            acc = w2s[0][c] * h[0]
            for j in range(1, hidden_size):
                acc = acc + w2s[j][c] * h[j]
            o_ref[c, pl.ds(off, sub), :] = (acc + b2s[c]).astype(o_ref.dtype)

        return carry

    lax.fori_loop(0, n_sub, body, None, unroll=True)


def net_forward(x, w1, b1, w2, b2, *, samples_per_step=64 * 1024):
    """x: (N, input_size) float. Returns (N, num_classes) f32."""
    n = x.shape[0]

    # Pad the batch only to one packed slab (8*128), never to the big tile.
    n_pad = _round_up(max(n, 1), _SUBLANES * _LANES)
    s_rows = n_pad // _LANES                     # multiple of 8

    # Minimal wrapper-side layout plumbing: feature-major transpose, zero-pad
    # the batch tail with jnp.pad, free row-major reshape to (F, rows, 128).
    x_fm = jnp.pad(x.astype(jnp.float32).T, ((0, 0), (0, n_pad - n)))
    x_packed = x_fm.reshape(input_size, s_rows, _LANES)

    # Rows (of 128 samples) per grid step: ~64K samples/step by default.
    # Double-buffered in+out block footprint at 512 rows is ~3.5 MiB -> fits
    # comfortably under v7x's 32 MiB scoped default (and v5e/v6e defaults).
    ts = min(samples_per_step // _LANES, s_rows)
    ts = max(_SUBLANES, (ts // _SUBLANES) * _SUBLANES)
    grid = (pl.cdiv(s_rows, ts),)

    # Inner strip-mine sub-slab height: bounds the live vreg working set.
    sub = next(s for s in (32, 16, 8) if ts % s == 0)

    out_packed = pl.pallas_call(
        functools.partial(mlp_kernel, sub=sub),
        out_shape=jax.ShapeDtypeStruct((num_classes, s_rows, _LANES), jnp.float32),
        grid=grid,
        in_specs=[
            # x tile: (4, ts, 128), walks along the packed batch-row axis.
            pl.BlockSpec((input_size, ts, _LANES), lambda i: (0, i, 0)),
            # Weights / biases: whole-array SMEM residents for all steps.
            pl.BlockSpec(memory_space=pltpu.MemorySpace.SMEM),  # w1 (4, 5)
            pl.BlockSpec(memory_space=pltpu.MemorySpace.SMEM),  # b1 (1, 5)
            pl.BlockSpec(memory_space=pltpu.MemorySpace.SMEM),  # w2 (5, 3)
            pl.BlockSpec(memory_space=pltpu.MemorySpace.SMEM),  # b2 (1, 3)
        ],
        out_specs=pl.BlockSpec((num_classes, ts, _LANES), lambda i: (0, i, 0)),
        compiler_params=pltpu.CompilerParams(
            dimension_semantics=("parallel",),   # megacore sharding on v7x
        ),
    )(x_packed, w1, b1, w2, b2)

    # Back to the conventional (N, C) layout for the caller (only 3N floats).
    return out_packed.reshape(num_classes, n_pad)[:, :n].T


def init_params(key):
    # Deterministic init mimicking torch.nn.Linear default:
    # U(-1/sqrt(fan_in), 1/sqrt(fan_in)) for both weight and bias.
    k1, k2, k3, k4 = jax.random.split(key, 4)
    bound1 = 1.0 / jnp.sqrt(float(input_size))
    bound2 = 1.0 / jnp.sqrt(float(hidden_size))
    w1 = jax.random.uniform(k1, (input_size, hidden_size), jnp.float32,
                            minval=-bound1, maxval=bound1)
    b1 = jax.random.uniform(k2, (1, hidden_size), jnp.float32,
                            minval=-bound1, maxval=bound1)
    w2 = jax.random.uniform(k3, (hidden_size, num_classes), jnp.float32,
                            minval=-bound2, maxval=bound2)
    b2 = jax.random.uniform(k4, (1, num_classes), jnp.float32,
                            minval=-bound2, maxval=bound2)
    return w1, b1, w2, b2


if __name__ == "__main__":
    key = jax.random.PRNGKey(0)
    k_x, k_x2, k_p = jax.random.split(key, 3)

    w1, b1, w2, b2 = init_params(k_p)

    # Small MinMax-scaled-like batch in [0, 1], shape (N, input_size).
    x = jax.random.uniform(k_x, (8, input_size), jnp.float32)
    out = jax.block_until_ready(net_forward(x, w1, b1, w2, b2))
    ref = jnp.maximum(x @ w1 + b1, 0.0) @ w2 + b2
    assert out.shape == (8, num_classes)
    assert jnp.allclose(out, ref, atol=1e-5, rtol=1e-5)

    # Larger batch: exercises the unrolled strip-mine loop (n_sub > 1).
    x2 = jax.random.uniform(k_x2, (5000, input_size), jnp.float32)
    out2 = jax.block_until_ready(net_forward(x2, w1, b1, w2, b2))
    ref2 = jnp.maximum(x2 @ w1 + b1, 0.0) @ w2 + b2
    assert out2.shape == (5000, num_classes)
    assert jnp.allclose(out2, ref2, atol=1e-5, rtol=1e-5)

    # Small per-step tile: exercises the multi-grid-step + partial-last-block
    # path (grid = cdiv, no padding to a multiple of the tile).
    out3 = jax.block_until_ready(
        net_forward(x2, w1, b1, w2, b2, samples_per_step=2048))
    assert out3.shape == (5000, num_classes)
    assert jnp.allclose(out3, ref2, atol=1e-5, rtol=1e-5)

    print("KERNEL_OK")
</pallas_src>

<mosaic_0001>
module attributes {stable_mosaic.version = 11 : i64} {
  func.func @mlp_kernel(%arg0: i32, %arg1: memref<4x8x128xf32, #tpu.memory_space<vmem>>, %arg2: memref<4x5xf32, #tpu.memory_space<smem>>, %arg3: memref<1x5xf32, #tpu.memory_space<smem>>, %arg4: memref<5x3xf32, #tpu.memory_space<smem>>, %arg5: memref<1x3xf32, #tpu.memory_space<smem>>, %arg6: memref<3x8x128xf32, #tpu.memory_space<vmem>>) attributes {dimension_semantics = [#tpu.dimension_semantics<parallel>], iteration_bounds = array<i64: 1>, scalar_prefetch = 0 : i64, scratch_operands = 0 : i64, tpu.core_type = #tpu.core_type<tc>, window_params = [{transform_indices = @transform_0, window_bounds = array<i64: 4, 8, 128>}, {transform_indices = @transform_1, window_bounds = array<i64: 4, 5>}, {transform_indices = @transform_2, window_bounds = array<i64: 1, 5>}, {transform_indices = @transform_3, window_bounds = array<i64: 5, 3>}, {transform_indices = @transform_4, window_bounds = array<i64: 1, 3>}, {transform_indices = @transform_5, window_bounds = array<i64: 3, 8, 128>}]} {
    %c0 = arith.constant 0 : index
    %c0_0 = arith.constant 0 : index
    %0 = memref.load %arg2[%c0, %c0_0] : memref<4x5xf32, #tpu.memory_space<smem>>
    %c0_1 = arith.constant 0 : index
    %c1 = arith.constant 1 : index
    %1 = memref.load %arg2[%c0_1, %c1] : memref<4x5xf32, #tpu.memory_space<smem>>
    %c0_2 = arith.constant 0 : index
    %c2 = arith.constant 2 : index
    %2 = memref.load %arg2[%c0_2, %c2] : memref<4x5xf32, #tpu.memory_space<smem>>
    %c0_3 = arith.constant 0 : index
    %c3 = arith.constant 3 : index
    %3 = memref.load %arg2[%c0_3, %c3] : memref<4x5xf32, #tpu.memory_space<smem>>
    %c0_4 = arith.constant 0 : index
    %c4 = arith.constant 4 : index
    %4 = memref.load %arg2[%c0_4, %c4] : memref<4x5xf32, #tpu.memory_space<smem>>
    %c1_5 = arith.constant 1 : index
    %c0_6 = arith.constant 0 : index
    %5 = memref.load %arg2[%c1_5, %c0_6] : memref<4x5xf32, #tpu.memory_space<smem>>
    %c1_7 = arith.constant 1 : index
    %c1_8 = arith.constant 1 : index
    %6 = memref.load %arg2[%c1_7, %c1_8] : memref<4x5xf32, #tpu.memory_space<smem>>
    %c1_9 = arith.constant 1 : index
    %c2_10 = arith.constant 2 : index
    %7 = memref.load %arg2[%c1_9, %c2_10] : memref<4x5xf32, #tpu.memory_space<smem>>
    %c1_11 = arith.constant 1 : index
    %c3_12 = arith.constant 3 : index
    %8 = memref.load %arg2[%c1_11, %c3_12] : memref<4x5xf32, #tpu.memory_space<smem>>
    %c1_13 = arith.constant 1 : index
    %c4_14 = arith.constant 4 : index
    %9 = memref.load %arg2[%c1_13, %c4_14] : memref<4x5xf32, #tpu.memory_space<smem>>
    %c2_15 = arith.constant 2 : index
    %c0_16 = arith.constant 0 : index
    %10 = memref.load %arg2[%c2_15, %c0_16] : memref<4x5xf32, #tpu.memory_space<smem>>
    %c2_17 = arith.constant 2 : index
    %c1_18 = arith.constant 1 : index
    %11 = memref.load %arg2[%c2_17, %c1_18] : memref<4x5xf32, #tpu.memory_space<smem>>
    %c2_19 = arith.constant 2 : index
    %c2_20 = arith.constant 2 : index
    %12 = memref.load %arg2[%c2_19, %c2_20] : memref<4x5xf32, #tpu.memory_space<smem>>
    %c2_21 = arith.constant 2 : index
    %c3_22 = arith.constant 3 : index
    %13 = memref.load %arg2[%c2_21, %c3_22] : memref<4x5xf32, #tpu.memory_space<smem>>
    %c2_23 = arith.constant 2 : index
    %c4_24 = arith.constant 4 : index
    %14 = memref.load %arg2[%c2_23, %c4_24] : memref<4x5xf32, #tpu.memory_space<smem>>
    %c3_25 = arith.constant 3 : index
    %c0_26 = arith.constant 0 : index
    %15 = memref.load %arg2[%c3_25, %c0_26] : memref<4x5xf32, #tpu.memory_space<smem>>
    %c3_27 = arith.constant 3 : index
    %c1_28 = arith.constant 1 : index
    %16 = memref.load %arg2[%c3_27, %c1_28] : memref<4x5xf32, #tpu.memory_space<smem>>
    %c3_29 = arith.constant 3 : index
    %c2_30 = arith.constant 2 : index
    %17 = memref.load %arg2[%c3_29, %c2_30] : memref<4x5xf32, #tpu.memory_space<smem>>
    %c3_31 = arith.constant 3 : index
    %c3_32 = arith.constant 3 : index
    %18 = memref.load %arg2[%c3_31, %c3_32] : memref<4x5xf32, #tpu.memory_space<smem>>
    %c3_33 = arith.constant 3 : index
    %c4_34 = arith.constant 4 : index
    %19 = memref.load %arg2[%c3_33, %c4_34] : memref<4x5xf32, #tpu.memory_space<smem>>
    %c0_35 = arith.constant 0 : index
    %c0_36 = arith.constant 0 : index
    %20 = memref.load %arg3[%c0_35, %c0_36] : memref<1x5xf32, #tpu.memory_space<smem>>
    %c0_37 = arith.constant 0 : index
    %c1_38 = arith.constant 1 : index
    %21 = memref.load %arg3[%c0_37, %c1_38] : memref<1x5xf32, #tpu.memory_space<smem>>
    %c0_39 = arith.constant 0 : index
    %c2_40 = arith.constant 2 : index
    %22 = memref.load %arg3[%c0_39, %c2_40] : memref<1x5xf32, #tpu.memory_space<smem>>
    %c0_41 = arith.constant 0 : index
    %c3_42 = arith.constant 3 : index
    %23 = memref.load %arg3[%c0_41, %c3_42] : memref<1x5xf32, #tpu.memory_space<smem>>
    %c0_43 = arith.constant 0 : index
    %c4_44 = arith.constant 4 : index
    %24 = memref.load %arg3[%c0_43, %c4_44] : memref<1x5xf32, #tpu.memory_space<smem>>
    %c0_45 = arith.constant 0 : index
    %c0_46 = arith.constant 0 : index
    %25 = memref.load %arg4[%c0_45, %c0_46] : memref<5x3xf32, #tpu.memory_space<smem>>
    %c0_47 = arith.constant 0 : index
    %c1_48 = arith.constant 1 : index
    %26 = memref.load %arg4[%c0_47, %c1_48] : memref<5x3xf32, #tpu.memory_space<smem>>
    %c0_49 = arith.constant 0 : index
    %c2_50 = arith.constant 2 : index
    %27 = memref.load %arg4[%c0_49, %c2_50] : memref<5x3xf32, #tpu.memory_space<smem>>
    %c1_51 = arith.constant 1 : index
    %c0_52 = arith.constant 0 : index
    %28 = memref.load %arg4[%c1_51, %c0_52] : memref<5x3xf32, #tpu.memory_space<smem>>
    %c1_53 = arith.constant 1 : index
    %c1_54 = arith.constant 1 : index
    %29 = memref.load %arg4[%c1_53, %c1_54] : memref<5x3xf32, #tpu.memory_space<smem>>
    %c1_55 = arith.constant 1 : index
    %c2_56 = arith.constant 2 : index
    %30 = memref.load %arg4[%c1_55, %c2_56] : memref<5x3xf32, #tpu.memory_space<smem>>
    %c2_57 = arith.constant 2 : index
    %c0_58 = arith.constant 0 : index
    %31 = memref.load %arg4[%c2_57, %c0_58] : memref<5x3xf32, #tpu.memory_space<smem>>
    %c2_59 = arith.constant 2 : index
    %c1_60 = arith.constant 1 : index
    %32 = memref.load %arg4[%c2_59, %c1_60] : memref<5x3xf32, #tpu.memory_space<smem>>
    %c2_61 = arith.constant 2 : index
    %c2_62 = arith.constant 2 : index
    %33 = memref.load %arg4[%c2_61, %c2_62] : memref<5x3xf32, #tpu.memory_space<smem>>
    %c3_63 = arith.constant 3 : index
    %c0_64 = arith.constant 0 : index
    %34 = memref.load %arg4[%c3_63, %c0_64] : memref<5x3xf32, #tpu.memory_space<smem>>
    %c3_65 = arith.constant 3 : index
    %c1_66 = arith.constant 1 : index
    %35 = memref.load %arg4[%c3_65, %c1_66] : memref<5x3xf32, #tpu.memory_space<smem>>
    %c3_67 = arith.constant 3 : index
    %c2_68 = arith.constant 2 : index
    %36 = memref.load %arg4[%c3_67, %c2_68] : memref<5x3xf32, #tpu.memory_space<smem>>
    %c4_69 = arith.constant 4 : index
    %c0_70 = arith.constant 0 : index
    %37 = memref.load %arg4[%c4_69, %c0_70] : memref<5x3xf32, #tpu.memory_space<smem>>
    %c4_71 = arith.constant 4 : index
    %c1_72 = arith.constant 1 : index
    %38 = memref.load %arg4[%c4_71, %c1_72] : memref<5x3xf32, #tpu.memory_space<smem>>
    %c4_73 = arith.constant 4 : index
    %c2_74 = arith.constant 2 : index
    %39 = memref.load %arg4[%c4_73, %c2_74] : memref<5x3xf32, #tpu.memory_space<smem>>
    %c0_75 = arith.constant 0 : index
    %c0_76 = arith.constant 0 : index
    %40 = memref.load %arg5[%c0_75, %c0_76] : memref<1x3xf32, #tpu.memory_space<smem>>
    %c0_77 = arith.constant 0 : index
    %c1_78 = arith.constant 1 : index
    %41 = memref.load %arg5[%c0_77, %c1_78] : memref<1x3xf32, #tpu.memory_space<smem>>
    %c0_79 = arith.constant 0 : index
    %c2_80 = arith.constant 2 : index
    %42 = memref.load %arg5[%c0_79, %c2_80] : memref<1x3xf32, #tpu.memory_space<smem>>
    %c0_i32 = arith.constant 0 : i32
    %c8_i32 = arith.constant 8 : i32
    %43 = arith.muli %c0_i32, %c8_i32 : i32
    %44 = tpu.assume_multiple %43, 8 : i32
    %c0_81 = arith.constant 0 : index
    %45 = arith.index_cast %44 : i32 to index
    %c0_82 = arith.constant 0 : index
    %46 = vector.load %arg1[%c0_81, %45, %c0_82] : memref<4x8x128xf32, #tpu.memory_space<vmem>>, vector<1x8x128xf32>
    %47 = vector.shape_cast %46 : vector<1x8x128xf32> to vector<8x128xf32>
    %c1_83 = arith.constant 1 : index
    %48 = arith.index_cast %44 : i32 to index
    %c0_84 = arith.constant 0 : index
    %49 = vector.load %arg1[%c1_83, %48, %c0_84] : memref<4x8x128xf32, #tpu.memory_space<vmem>>, vector<1x8x128xf32>
    %50 = vector.shape_cast %49 : vector<1x8x128xf32> to vector<8x128xf32>
    %c2_85 = arith.constant 2 : index
    %51 = arith.index_cast %44 : i32 to index
    %c0_86 = arith.constant 0 : index
    %52 = vector.load %arg1[%c2_85, %51, %c0_86] : memref<4x8x128xf32, #tpu.memory_space<vmem>>, vector<1x8x128xf32>
    %53 = vector.shape_cast %52 : vector<1x8x128xf32> to vector<8x128xf32>
    %c3_87 = arith.constant 3 : index
    %54 = arith.index_cast %44 : i32 to index
    %c0_88 = arith.constant 0 : index
    %55 = vector.load %arg1[%c3_87, %54, %c0_88] : memref<4x8x128xf32, #tpu.memory_space<vmem>>, vector<1x8x128xf32>
    %56 = vector.shape_cast %55 : vector<1x8x128xf32> to vector<8x128xf32>
    %57 = vector.broadcast %0 : f32 to vector<8x128xf32>
    %58 = arith.mulf %57, %47 : vector<8x128xf32>
    %59 = vector.broadcast %5 : f32 to vector<8x128xf32>
    %60 = arith.mulf %59, %50 : vector<8x128xf32>
    %61 = arith.addf %58, %60 : vector<8x128xf32>
    %62 = vector.broadcast %10 : f32 to vector<8x128xf32>
    %63 = arith.mulf %62, %53 : vector<8x128xf32>
    %64 = arith.addf %61, %63 : vector<8x128xf32>
    %65 = vector.broadcast %15 : f32 to vector<8x128xf32>
    %66 = arith.mulf %65, %56 : vector<8x128xf32>
    %67 = arith.addf %64, %66 : vector<8x128xf32>
    %68 = vector.broadcast %20 : f32 to vector<8x128xf32>
    %69 = arith.addf %67, %68 : vector<8x128xf32>
    %cst = arith.constant 0.000000e+00 : f32
    %70 = vector.broadcast %cst : f32 to vector<8x128xf32>
    %71 = arith.maximumf %69, %70 : vector<8x128xf32>
    %72 = vector.broadcast %1 : f32 to vector<8x128xf32>
    %73 = arith.mulf %72, %47 : vector<8x128xf32>
    %74 = vector.broadcast %6 : f32 to vector<8x128xf32>
    %75 = arith.mulf %74, %50 : vector<8x128xf32>
    %76 = arith.addf %73, %75 : vector<8x128xf32>
    %77 = vector.broadcast %11 : f32 to vector<8x128xf32>
    %78 = arith.mulf %77, %53 : vector<8x128xf32>
    %79 = arith.addf %76, %78 : vector<8x128xf32>
    %80 = vector.broadcast %16 : f32 to vector<8x128xf32>
    %81 = arith.mulf %80, %56 : vector<8x128xf32>
    %82 = arith.addf %79, %81 : vector<8x128xf32>
    %83 = vector.broadcast %21 : f32 to vector<8x128xf32>
    %84 = arith.addf %82, %83 : vector<8x128xf32>
    %cst_89 = arith.constant 0.000000e+00 : f32
    %85 = vector.broadcast %cst_89 : f32 to vector<8x128xf32>
    %86 = arith.maximumf %84, %85 : vector<8x128xf32>
    %87 = vector.broadcast %2 : f32 to vector<8x128xf32>
    %88 = arith.mulf %87, %47 : vector<8x128xf32>
    %89 = vector.broadcast %7 : f32 to vector<8x128xf32>
    %90 = arith.mulf %89, %50 : vector<8x128xf32>
    %91 = arith.addf %88, %90 : vector<8x128xf32>
    %92 = vector.broadcast %12 : f32 to vector<8x128xf32>
    %93 = arith.mulf %92, %53 : vector<8x128xf32>
    %94 = arith.addf %91, %93 : vector<8x128xf32>
    %95 = vector.broadcast %17 : f32 to vector<8x128xf32>
    %96 = arith.mulf %95, %56 : vector<8x128xf32>
    %97 = arith.addf %94, %96 : vector<8x128xf32>
    %98 = vector.broadcast %22 : f32 to vector<8x128xf32>
    %99 = arith.addf %97, %98 : vector<8x128xf32>
    %cst_90 = arith.constant 0.000000e+00 : f32
    %100 = vector.broadcast %cst_90 : f32 to vector<8x128xf32>
    %101 = arith.maximumf %99, %100 : vector<8x128xf32>
    %102 = vector.broadcast %3 : f32 to vector<8x128xf32>
    %103 = arith.mulf %102, %47 : vector<8x128xf32>
    %104 = vector.broadcast %8 : f32 to vector<8x128xf32>
    %105 = arith.mulf %104, %50 : vector<8x128xf32>
    %106 = arith.addf %103, %105 : vector<8x128xf32>
    %107 = vector.broadcast %13 : f32 to vector<8x128xf32>
    %108 = arith.mulf %107, %53 : vector<8x128xf32>
    %109 = arith.addf %106, %108 : vector<8x128xf32>
    %110 = vector.broadcast %18 : f32 to vector<8x128xf32>
    %111 = arith.mulf %110, %56 : vector<8x128xf32>
    %112 = arith.addf %109, %111 : vector<8x128xf32>
    %113 = vector.broadcast %23 : f32 to vector<8x128xf32>
    %114 = arith.addf %112, %113 : vector<8x128xf32>
    %cst_91 = arith.constant 0.000000e+00 : f32
    %115 = vector.broadcast %cst_91 : f32 to vector<8x128xf32>
    %116 = arith.maximumf %114, %115 : vector<8x128xf32>
    %117 = vector.broadcast %4 : f32 to vector<8x128xf32>
    %118 = arith.mulf %117, %47 : vector<8x128xf32>
    %119 = vector.broadcast %9 : f32 to vector<8x128xf32>
    %120 = arith.mulf %119, %50 : vector<8x128xf32>
    %121 = arith.addf %118, %120 : vector<8x128xf32>
    %122 = vector.broadcast %14 : f32 to vector<8x128xf32>
    %123 = arith.mulf %122, %53 : vector<8x128xf32>
    %124 = arith.addf %121, %123 : vector<8x128xf32>
    %125 = vector.broadcast %19 : f32 to vector<8x128xf32>
    %126 = arith.mulf %125, %56 : vector<8x128xf32>
    %127 = arith.addf %124, %126 : vector<8x128xf32>
    %128 = vector.broadcast %24 : f32 to vector<8x128xf32>
    %129 = arith.addf %127, %128 : vector<8x128xf32>
    %cst_92 = arith.constant 0.000000e+00 : f32
    %130 = vector.broadcast %cst_92 : f32 to vector<8x128xf32>
    %131 = arith.maximumf %129, %130 : vector<8x128xf32>
    %132 = vector.broadcast %25 : f32 to vector<8x128xf32>
    %133 = arith.mulf %132, %71 : vector<8x128xf32>
    %134 = vector.broadcast %28 : f32 to vector<8x128xf32>
    %135 = arith.mulf %134, %86 : vector<8x128xf32>
    %136 = arith.addf %133, %135 : vector<8x128xf32>
    %137 = vector.broadcast %31 : f32 to vector<8x128xf32>
    %138 = arith.mulf %137, %101 : vector<8x128xf32>
    %139 = arith.addf %136, %138 : vector<8x128xf32>
    %140 = vector.broadcast %34 : f32 to vector<8x128xf32>
    %141 = arith.mulf %140, %116 : vector<8x128xf32>
    %142 = arith.addf %139, %141 : vector<8x128xf32>
    %143 = vector.broadcast %37 : f32 to vector<8x128xf32>
    %144 = arith.mulf %143, %131 : vector<8x128xf32>
    %145 = arith.addf %142, %144 : vector<8x128xf32>
    %146 = vector.broadcast %40 : f32 to vector<8x128xf32>
    %147 = arith.addf %145, %146 : vector<8x128xf32>
    %c0_93 = arith.constant 0 : index
    %148 = arith.index_cast %44 : i32 to index
    %c0_94 = arith.constant 0 : index
    %149 = vector.load %arg6[%c0_93, %148, %c0_94] : memref<3x8x128xf32, #tpu.memory_space<vmem>>, vector<1x8x128xf32>
    %150 = vector.shape_cast %149 : vector<1x8x128xf32> to vector<8x128xf32>
    %151 = vector.shape_cast %147 : vector<8x128xf32> to vector<1x8x128xf32>
    tpu.vector_store %arg6[%c0_93, %148, %c0_94], %151 {strides = array<i32>} : memref<3x8x128xf32, #tpu.memory_space<vmem>>, vector<1x8x128xf32>,
    %152 = vector.broadcast %26 : f32 to vector<8x128xf32>
    %153 = arith.mulf %152, %71 : vector<8x128xf32>
    %154 = vector.broadcast %29 : f32 to vector<8x128xf32>
    %155 = arith.mulf %154, %86 : vector<8x128xf32>
    %156 = arith.addf %153, %155 : vector<8x128xf32>
    %157 = vector.broadcast %32 : f32 to vector<8x128xf32>
    %158 = arith.mulf %157, %101 : vector<8x128xf32>
    %159 = arith.addf %156, %158 : vector<8x128xf32>
    %160 = vector.broadcast %35 : f32 to vector<8x128xf32>
    %161 = arith.mulf %160, %116 : vector<8x128xf32>
    %162 = arith.addf %159, %161 : vector<8x128xf32>
    %163 = vector.broadcast %38 : f32 to vector<8x128xf32>
    %164 = arith.mulf %163, %131 : vector<8x128xf32>
    %165 = arith.addf %162, %164 : vector<8x128xf32>
    %166 = vector.broadcast %41 : f32 to vector<8x128xf32>
    %167 = arith.addf %165, %166 : vector<8x128xf32>
    %c1_95 = arith.constant 1 : index
    %168 = arith.index_cast %44 : i32 to index
    %c0_96 = arith.constant 0 : index
    %169 = vector.load %arg6[%c1_95, %168, %c0_96] : memref<3x8x128xf32, #tpu.memory_space<vmem>>, vector<1x8x128xf32>
    %170 = vector.shape_cast %169 : vector<1x8x128xf32> to vector<8x128xf32>
    %171 = vector.shape_cast %167 : vector<8x128xf32> to vector<1x8x128xf32>
    tpu.vector_store %arg6[%c1_95, %168, %c0_96], %171 {strides = array<i32>} : memref<3x8x128xf32, #tpu.memory_space<vmem>>, vector<1x8x128xf32>,
    %172 = vector.broadcast %27 : f32 to vector<8x128xf32>
    %173 = arith.mulf %172, %71 : vector<8x128xf32>
    %174 = vector.broadcast %30 : f32 to vector<8x128xf32>
    %175 = arith.mulf %174, %86 : vector<8x128xf32>
    %176 = arith.addf %173, %175 : vector<8x128xf32>
    %177 = vector.broadcast %33 : f32 to vector<8x128xf32>
    %178 = arith.mulf %177, %101 : vector<8x128xf32>
    %179 = arith.addf %176, %178 : vector<8x128xf32>
    %180 = vector.broadcast %36 : f32 to vector<8x128xf32>
    %181 = arith.mulf %180, %116 : vector<8x128xf32>
    %182 = arith.addf %179, %181 : vector<8x128xf32>
    %183 = vector.broadcast %39 : f32 to vector<8x128xf32>
    %184 = arith.mulf %183, %131 : vector<8x128xf32>
    %185 = arith.addf %182, %184 : vector<8x128xf32>
    %186 = vector.broadcast %42 : f32 to vector<8x128xf32>
    %187 = arith.addf %185, %186 : vector<8x128xf32>
    %c2_97 = arith.constant 2 : index
    %188 = arith.index_cast %44 : i32 to index
    %c0_98 = arith.constant 0 : index
    %189 = vector.load %arg6[%c2_97, %188, %c0_98] : memref<3x8x128xf32, #tpu.memory_space<vmem>>, vector<1x8x128xf32>
    %190 = vector.shape_cast %189 : vector<1x8x128xf32> to vector<8x128xf32>
    %191 = vector.shape_cast %187 : vector<8x128xf32> to vector<1x8x128xf32>
    tpu.vector_store %arg6[%c2_97, %188, %c0_98], %191 {strides = array<i32>} : memref<3x8x128xf32, #tpu.memory_space<vmem>>, vector<1x8x128xf32>,
    %c1_i32 = arith.constant 1 : i32
    return
  }
  func.func @transform_0(%arg0: i32) -> (i32, i32, i32) {
    %c0_i32 = arith.constant 0 : i32
    %c0_i32_0 = arith.constant 0 : i32
    %c0_i32_1 = arith.constant 0 : i32
    return %c0_i32, %arg0, %c0_i32_0 : i32, i32, i32
  }
  func.func @transform_1(%arg0: i32) -> (i32, i32) {
    %c0_i32 = arith.constant 0 : i32
    %c0_i32_0 = arith.constant 0 : i32
    %c0_i32_1 = arith.constant 0 : i32
    return %c0_i32, %c0_i32_0 : i32, i32
  }
  func.func @transform_2(%arg0: i32) -> (i32, i32) {
    %c0_i32 = arith.constant 0 : i32
    %c0_i32_0 = arith.constant 0 : i32
    %c0_i32_1 = arith.constant 0 : i32
    return %c0_i32, %c0_i32_0 : i32, i32
  }
  func.func @transform_3(%arg0: i32) -> (i32, i32) {
    %c0_i32 = arith.constant 0 : i32
    %c0_i32_0 = arith.constant 0 : i32
    %c0_i32_1 = arith.constant 0 : i32
    return %c0_i32, %c0_i32_0 : i32, i32
  }
  func.func @transform_4(%arg0: i32) -> (i32, i32) {
    %c0_i32 = arith.constant 0 : i32
    %c0_i32_0 = arith.constant 0 : i32
    %c0_i32_1 = arith.constant 0 : i32
    return %c0_i32, %c0_i32_0 : i32, i32
  }
  func.func @transform_5(%arg0: i32) -> (i32, i32, i32) {
    %c0_i32 = arith.constant 0 : i32
    %c0_i32_0 = arith.constant 0 : i32
    %c0_i32_1 = arith.constant 0 : i32
    return %c0_i32, %arg0, %c0_i32_0 : i32, i32, i32
  }
}

</mosaic_0001>

<llo_original>
// kernel: tpu_custom_call.1
$region0: #{tpu_custom_call.1}
  #allocation0 [shape = 'u32[]', space=smem, size = 0x4, offset = 0x4, fixed_abs, tag = 'smem constant byte address 0x4 - core index']
  #allocation1 [shape = 'u32[144,128]{1,0:T(1,128)}', space=vmem, size = 0x12000, scoped, tag = 'internal scratch']
  %s0 = inlined_call_operand.hbm [shape: f32[4,8,128], index: 0, kind: input, shape index: {}]
  %s1 = inlined_call_operand.vmem [shape: f32[4,5], index: 1, kind: input, shape index: {}]
  %s2 = inlined_call_operand.vmem [shape: f32[1,5], index: 2, kind: input, shape index: {}]
  %s3 = inlined_call_operand.vmem [shape: f32[5,3], index: 3, kind: input, shape index: {}]
  %s4 = inlined_call_operand.vmem [shape: f32[1,3], index: 4, kind: input, shape index: {}]
  %s5 = inlined_call_operand.hbm [shape: f32[3,8,128], index: 5, kind: output, shape index: {}]
  %s6 = sld [smem:[#allocation0]]
  $region50: #{tpu_custom_call.1} parent=0
    _
  %s8 = ssub.s32 1, %s6
  %s9 = scalar_select 0, %s8, %s6
  $region1: #{tpu_custom_call.1} parent=0
    #allocation2 [shape = 'u8[16384]{0}', space=vmem, size = 0x4000, scoped, tag = 'input window, operand 0, single buffered']
    #allocation3 [shape = 's32[1]{0}', space=sflag, size = 0x4, scoped, tag = 'scoped memory for tpu_custom_call.1']
    #allocation4 [shape = 's32[1]{0}', space=sflag, size = 0x4, scoped, tag = 'scoped memory for tpu_custom_call.1']
    #allocation5 [shape = 's32[1]{0}', space=sflag, size = 0x4, scoped, tag = 'scoped memory for tpu_custom_call.1']
    #allocation6 [shape = 'u8[2048]{0}', space=smem, size = 0x800, scoped, tag = 'input window, operand 1, single buffered']
    #allocation7 [shape = 'u8[512]{0}', space=smem, size = 0x200, scoped, tag = 'input window, operand 2, single buffered']
    #allocation8 [shape = 's32[1]{0}', space=sflag, size = 0x4, scoped, tag = 'scoped memory for tpu_custom_call.1']
    #allocation9 [shape = 'u8[4096]{0}', space=smem, size = 0x1000, scoped, tag = 'input window, operand 3, single buffered']
    #allocation10 [shape = 'u8[512]{0}', space=smem, size = 0x200, scoped, tag = 'input window, operand 4, single buffered']
    #allocation11 [shape = 's32[1]{0}', space=sflag, size = 0x4, scoped, tag = 'scoped memory for tpu_custom_call.1']
    #allocation12 [shape = 'u8[12288]{0}', space=vmem, size = 0x3000, scoped, tag = 'output window, operand 0, single buffered']
    %10 = vsyncpa [#allocation3], 0
    %11 = vsyncpa [#allocation5], 0
    %12 = vsyncpa [#allocation8], 0
    %13 = vsyncpa [#allocation11], 0
    %14 = vsyncpa [#allocation4], 0
    // Predicated region
    $region2: #{tpu_custom_call.1} parent=1 // pred_check
      _
    $region3: #{tpu_custom_call.1} parent=1 // pred_check_branch
      %16 = sbr.rel (0) target = $region5
    $region4: #{tpu_custom_call.1} parent=1 // pred_region
      %s18 = ssub.s32 512, 512
      %19 = vsyncadd [#allocation3], %s18
      %s20 = sshll.u32 [#allocation2], 4
      %s21 = int_to_ptr.vmem [resolvable:$true] %s20
      %26 = dma.hbm_to_vmem [thread:$0]  %s0, 512, %s21, [#allocation3], 128, 128, 8
    $region5: #{tpu_custom_call.1} parent=1 // pred_fallthru
      _
    // Predicated region
    $region6: #{tpu_custom_call.1} parent=1 // pred_check
      _
    $region7: #{tpu_custom_call.1} parent=1 // pred_check_branch
      %28 = sbr.rel (0) target = $region9
    $region8: #{tpu_custom_call.1} parent=1 // pred_region
      %s30 = ssub.s32 64, 64
      %31 = vsyncadd [#allocation5], %s30
      %s33 = sshll.u32 %s1, 4
      %s34 = int_to_ptr.vmem [resolvable:$true] %s33
      %36 = dma.vmem_to_smem %s34, 64, [#allocation6], [#allocation5]
    $region9: #{tpu_custom_call.1} parent=1 // pred_fallthru
      _
    // Predicated region
    $region10: #{tpu_custom_call.1} parent=1 // pred_check
      _
    $region11: #{tpu_custom_call.1} parent=1 // pred_check_branch
      %38 = sbr.rel (0) target = $region13
    $region12: #{tpu_custom_call.1} parent=1 // pred_region
      %s40 = ssub.s32 16, 16
      %41 = vsyncadd [#allocation8], %s40
      %s43 = sshll.u32 %s2, 4
      %s44 = int_to_ptr.vmem [resolvable:$true] %s43
      %46 = dma.vmem_to_smem %s44, 16, [#allocation7], [#allocation8]
    $region13: #{tpu_custom_call.1} parent=1 // pred_fallthru
      _
    // Predicated region
    $region14: #{tpu_custom_call.1} parent=1 // pred_check
      _
    $region15: #{tpu_custom_call.1} parent=1 // pred_check_branch
      %48 = sbr.rel (0) target = $region17
    $region16: #{tpu_custom_call.1} parent=1 // pred_region
      %s50 = ssub.s32 128, 128
      %51 = vsyncadd [#allocation8], %s50
      %s53 = sshll.u32 %s3, 4
      %s54 = int_to_ptr.vmem [resolvable:$true] %s53
      %56 = dma.vmem_to_smem %s54, 128, [#allocation9], [#allocation8]
    $region17: #{tpu_custom_call.1} parent=1 // pred_fallthru
      _
    // Predicated region
    $region18: #{tpu_custom_call.1} parent=1 // pred_check
      _
    $region19: #{tpu_custom_call.1} parent=1 // pred_check_branch
      %58 = sbr.rel (0) target = $region21
    $region20: #{tpu_custom_call.1} parent=1 // pred_region
      %s60 = ssub.s32 16, 16
      %61 = vsyncadd [#allocation11], %s60
      %s63 = sshll.u32 %s4, 4
      %s64 = int_to_ptr.vmem [resolvable:$true] %s63
      %66 = dma.vmem_to_smem %s64, 16, [#allocation10], [#allocation11]
    $region21: #{tpu_custom_call.1} parent=1 // pred_fallthru
      _
    // Predicated region
    $region22: #{tpu_custom_call.1} parent=1 // pred_check
      _
    $region23: #{tpu_custom_call.1} parent=1 // pred_check_branch
      %68 = sbr.rel (0) target = $region25
    $region24: #{tpu_custom_call.1} parent=1 // pred_region
      %69 = dma.done [#allocation3], 512
    $region25: #{tpu_custom_call.1} parent=1 // pred_fallthru
      _
    // Predicated region
    $region26: #{tpu_custom_call.1} parent=1 // pred_check
      _
    $region27: #{tpu_custom_call.1} parent=1 // pred_check_branch
      %71 = sbr.rel (0) target = $region29
    $region28: #{tpu_custom_call.1} parent=1 // pred_region
      %72 = dma.done [#allocation5], 64
    $region29: #{tpu_custom_call.1} parent=1 // pred_fallthru
      _
    // Predicated region
    $region30: #{tpu_custom_call.1} parent=1 // pred_check
      _
    $region31: #{tpu_custom_call.1} parent=1 // pred_check_branch
      %74 = sbr.rel (0) target = $region33
    $region32: #{tpu_custom_call.1} parent=1 // pred_region
      %75 = dma.done [#allocation8], 16
    $region33: #{tpu_custom_call.1} parent=1 // pred_fallthru
      _
    // Predicated region
    $region34: #{tpu_custom_call.1} parent=1 // pred_check
      _
    $region35: #{tpu_custom_call.1} parent=1 // pred_check_branch
      %77 = sbr.rel (0) target = $region37
    $region36: #{tpu_custom_call.1} parent=1 // pred_region
      %78 = dma.done [#allocation8], 128
    $region37: #{tpu_custom_call.1} parent=1 // pred_fallthru
      _
    // Predicated region
    $region38: #{tpu_custom_call.1} parent=1 // pred_check
      _
    $region39: #{tpu_custom_call.1} parent=1 // pred_check_branch
      %80 = sbr.rel (0) target = $region41
    $region40: #{tpu_custom_call.1} parent=1 // pred_region
      %81 = dma.done [#allocation11], 16
    $region41: #{tpu_custom_call.1} parent=1 // pred_fallthru
      _
    %82 = sfence
    %s83 = sld [smem:[#allocation6]]
    %s84 = sld [smem:[#allocation6 + $0x1]]
    %s85 = sld [smem:[#allocation6 + $0x2]]
    %s86 = sld [smem:[#allocation6 + $0x3]]
    %s87 = sld [smem:[#allocation6 + $0x4]]
    %s88 = sld [smem:[#allocation6 + $0x80]]
    %s89 = sld [smem:[#allocation6 + $0x81]]
    %s90 = sld [smem:[#allocation6 + $0x82]]
    %s91 = sld [smem:[#allocation6 + $0x83]]
    %s92 = sld [smem:[#allocation6 + $0x84]]
    %s93 = sld [smem:[#allocation6 + $0x100]]
    %s94 = sld [smem:[#allocation6 + $0x101]]
    %s95 = sld [smem:[#allocation6 + $0x102]]
    %s96 = sld [smem:[#allocation6 + $0x103]]
    %s97 = sld [smem:[#allocation6 + $0x104]]
    %s98 = sld [smem:[#allocation6 + $0x180]]
    %s99 = sld [smem:[#allocation6 + $0x181]]
    %s100 = sld [smem:[#allocation6 + $0x182]]
    %s101 = sld [smem:[#allocation6 + $0x183]]
    %s102 = sld [smem:[#allocation6 + $0x184]]
    %s103 = sld [smem:[#allocation7]]
    %s104 = sld [smem:[#allocation7 + $0x1]]
    %s105 = sld [smem:[#allocation7 + $0x2]]
    %s106 = sld [smem:[#allocation7 + $0x3]]
    %s107 = sld [smem:[#allocation7 + $0x4]]
    %s108 = sld [smem:[#allocation9]]
    %s109 = sld [smem:[#allocation9 + $0x1]]
    %s110 = sld [smem:[#allocation9 + $0x2]]
    %s111 = sld [smem:[#allocation9 + $0x80]]
    %s112 = sld [smem:[#allocation9 + $0x81]]
    %s113 = sld [smem:[#allocation9 + $0x82]]
    %s114 = sld [smem:[#allocation9 + $0x100]]
    %s115 = sld [smem:[#allocation9 + $0x101]]
    %s116 = sld [smem:[#allocation9 + $0x102]]
    %s117 = sld [smem:[#allocation9 + $0x180]]
    %s118 = sld [smem:[#allocation9 + $0x181]]
    %s119 = sld [smem:[#allocation9 + $0x182]]
    %s120 = sld [smem:[#allocation9 + $0x200]]
    %s121 = sld [smem:[#allocation9 + $0x201]]
    %s122 = sld [smem:[#allocation9 + $0x202]]
    %s123 = sld [smem:[#allocation10]]
    %s124 = sld [smem:[#allocation10 + $0x1]]
    %s125 = sld [smem:[#allocation10 + $0x2]]
    %v126 = vld [vmem:[#allocation2] sm:$0xff]
    %s127 = sadd.s32 0, 8
    %s128 = scalar_lea.vmem [#allocation2], %s127
    %v129 = vld [vmem:[%s128] sm:$0xff]
    %s130 = sadd.s32 0, 16
    %s131 = scalar_lea.vmem [#allocation2], %s130
    %v132 = vld [vmem:[%s131] sm:$0xff]
    %s133 = sadd.s32 0, 24
    %s134 = scalar_lea.vmem [#allocation2], %s133
    %v135 = vld [vmem:[%s134] sm:$0xff]
    %v136 = vstv %s83
    %v137 = vmul.f32 %v136, %v126
    %v138 = vstv %s88
    %v139 = vmul.f32 %v138, %v129
    %v140 = vadd.f32 %v137, %v139
    %v141 = vstv %s93
    %v142 = vmul.f32 %v141, %v132
    %v143 = vadd.f32 %v140, %v142
    %v144 = vstv %s98
    %v145 = vmul.f32 %v144, %v135
    %v146 = vadd.f32 %v143, %v145
    %v147 = vstv %s103
    %v148 = vadd.f32 %v146, %v147
    %v149 = vmax.f32 %v148, 0.0
    %v150 = vstv %s84
    %v151 = vmul.f32 %v150, %v126
    %v152 = vstv %s89
    %v153 = vmul.f32 %v152, %v129
    %v154 = vadd.f32 %v151, %v153
    %v155 = vstv %s94
    %v156 = vmul.f32 %v155, %v132
    %v157 = vadd.f32 %v154, %v156
    %v158 = vstv %s99
    %v159 = vmul.f32 %v158, %v135
    %v160 = vadd.f32 %v157, %v159
    %v161 = vstv %s104
    %v162 = vadd.f32 %v160, %v161
    %v163 = vmax.f32 %v162, 0.0
    %v164 = vstv %s85
    %v165 = vmul.f32 %v164, %v126
    %v166 = vstv %s90
    %v167 = vmul.f32 %v166, %v129
    %v168 = vadd.f32 %v165, %v167
    %v169 = vstv %s95
    %v170 = vmul.f32 %v169, %v132
    %v171 = vadd.f32 %v168, %v170
    %v172 = vstv %s100
    %v173 = vmul.f32 %v172, %v135
    %v174 = vadd.f32 %v171, %v173
    %v175 = vstv %s105
    %v176 = vadd.f32 %v174, %v175
    %v177 = vmax.f32 %v176, 0.0
    %v178 = vstv %s86
    %v179 = vmul.f32 %v178, %v126
    %v180 = vstv %s91
    %v181 = vmul.f32 %v180, %v129
    %v182 = vadd.f32 %v179, %v181
    %v183 = vstv %s96
    %v184 = vmul.f32 %v183, %v132
    %v185 = vadd.f32 %v182, %v184
    %v186 = vstv %s101
    %v187 = vmul.f32 %v186, %v135
    %v188 = vadd.f32 %v185, %v187
    %v189 = vstv %s106
    %v190 = vadd.f32 %v188, %v189
    %v191 = vmax.f32 %v190, 0.0
    %v192 = vstv %s87
    %v193 = vmul.f32 %v192, %v126
    %v194 = vstv %s92
    %v195 = vmul.f32 %v194, %v129
    %v196 = vadd.f32 %v193, %v195
    %v197 = vstv %s97
    %v198 = vmul.f32 %v197, %v132
    %v199 = vadd.f32 %v196, %v198
    %v200 = vstv %s102
    %v201 = vmul.f32 %v200, %v135
    %v202 = vadd.f32 %v199, %v201
    %v203 = vstv %s107
    %v204 = vadd.f32 %v202, %v203
    %v205 = vmax.f32 %v204, 0.0
    %v206 = vstv %s108
    %v207 = vmul.f32 %v206, %v149
    %v208 = vstv %s111
    %v209 = vmul.f32 %v208, %v163
    %v210 = vadd.f32 %v207, %v209
    %v211 = vstv %s114
    %v212 = vmul.f32 %v211, %v177
    %v213 = vadd.f32 %v210, %v212
    %v214 = vstv %s117
    %v215 = vmul.f32 %v214, %v191
    %v216 = vadd.f32 %v213, %v215
    %v217 = vstv %s120
    %v218 = vmul.f32 %v217, %v205
    %v219 = vadd.f32 %v216, %v218
    %v220 = vstv %s123
    %v221 = vadd.f32 %v219, %v220
    %222 = vst [vmem:[#allocation12] sm:$0xff] %v221
    %v223 = vstv %s109
    %v224 = vmul.f32 %v223, %v149
    %v225 = vstv %s112
    %v226 = vmul.f32 %v225, %v163
    %v227 = vadd.f32 %v224, %v226
    %v228 = vstv %s115
    %v229 = vmul.f32 %v228, %v177
    %v230 = vadd.f32 %v227, %v229
    %v231 = vstv %s118
    %v232 = vmul.f32 %v231, %v191
    %v233 = vadd.f32 %v230, %v232
    %v234 = vstv %s121
    %v235 = vmul.f32 %v234, %v205
    %v236 = vadd.f32 %v233, %v235
    %v237 = vstv %s124
    %v238 = vadd.f32 %v236, %v237
    %s239 = scalar_lea.vmem [#allocation12], %s127
    %240 = vst [vmem:[%s239] sm:$0xff] %v238
    %v241 = vstv %s110
    %v242 = vmul.f32 %v241, %v149
    %v243 = vstv %s113
    %v244 = vmul.f32 %v243, %v163
    %v245 = vadd.f32 %v242, %v244
    %v246 = vstv %s116
    %v247 = vmul.f32 %v246, %v177
    %v248 = vadd.f32 %v245, %v247
    %v249 = vstv %s119
    %v250 = vmul.f32 %v249, %v191
    %v251 = vadd.f32 %v248, %v250
    %v252 = vstv %s122
    %v253 = vmul.f32 %v252, %v205
    %v254 = vadd.f32 %v251, %v253
    %v255 = vstv %s125
    %v256 = vadd.f32 %v254, %v255
    %s257 = scalar_lea.vmem [#allocation12], %s130
    %258 = vst [vmem:[%s257] sm:$0xff] %v256
    // Predicated region
    $region42: #{tpu_custom_call.1} parent=1 // pred_check
      _
    $region43: #{tpu_custom_call.1} parent=1 // pred_check_branch
      %260 = sbr.rel (0) target = $region45
    $region44: #{tpu_custom_call.1} parent=1 // pred_region
      %s262 = ssub.s32 384, 384
      %263 = vsyncadd [#allocation4], %s262
      %s264 = sshll.u32 [#allocation12], 4
      %s265 = int_to_ptr.vmem [resolvable:$true] %s264
      %270 = dma.vmem_to_hbm [thread:$0]  %s265, 384, %s5, [#allocation4], 128, 128, 8
    $region45: #{tpu_custom_call.1} parent=1 // pred_fallthru
      _
    // Predicated region
    $region46: #{tpu_custom_call.1} parent=1 // pred_check
      _
    $region47: #{tpu_custom_call.1} parent=1 // pred_check_branch
      %272 = sbr.rel (0) target = $region49
    $region48: #{tpu_custom_call.1} parent=1 // pred_region
      %273 = dma.done [#allocation4], 384
    $region49: #{tpu_custom_call.1} parent=1 // pred_fallthru
      _
    %274 = vsyncpa [#allocation3], 1
    %275 = vsyncpa [#allocation4], 1
    %276 = vsyncpa [#allocation5], 1
    %277 = vsyncpa [#allocation8], 1
    %278 = vsyncpa [#allocation11], 1

</llo_original>
